<compile_context>
chip_gen: v5e
topology: v5e:2x2
jax: 0.10.0
libtpu: 0.0.40
codegen_flags: <defaults>
</compile_context>

<pallas_src>
import jax
import jax.numpy as jnp
from jax.experimental import pallas as pl
from jax.experimental.pallas import tpu as pltpu


def _round_up(x, m):
    return (x + m - 1) // m * m


def _center_loss_kernel(x_ref, c_ref, out_ref):
    """One row block: out[i, 0] = clamp(||x_i - c_{y_i}||^2, 1e-12, 1e12)."""
    diff = x_ref[...] - c_ref[...]                         # (blk_n, d) f32
    sq = jnp.sum(diff * diff, axis=1, keepdims=True)       # (blk_n, 1)
    out_ref[...] = jnp.clip(sq, 1e-12, 1e12)


def center_loss(x, labels, centers, *, row_block=1024):
    """Pallas TPU implementation of CenterLoss.forward(x, labels) with `centers`.

    x: (N, D) features, labels: (N,) int class ids, centers: (C, D) parameters.
    """
    n, d = x.shape
    c_num, d_c = centers.shape
    assert d == d_c, "feature dims of x and centers must match"

    x_f = x.astype(jnp.float32)
    # Per-label gather of the one relevant center per row (O(N*D) instead of
    # touching all C*D centers inside the kernel).
    c_sel = jnp.take(centers.astype(jnp.float32), labels.astype(jnp.int32), axis=0)

    # VMEM budget: ~75% of physical capacity, leaving headroom for Mosaic
    # internal scratch / semaphores (important on v7x where physical = 64 MiB).
    try:
        vmem_cap = pltpu.get_tpu_info().vmem_capacity_bytes
    except Exception:  # pragma: no cover - conservative fallback
        vmem_cap = 64 * 1024 * 1024
    vmem_limit = int(0.75 * vmem_cap)

    # Row-block selection: one block if the whole (double-buffered) batch fits
    # comfortably, else 128-aligned tiles sized against the VMEM budget.
    bytes_per_row = 2 * 2 * d * 4            # x + gathered centers, double-buffered, f32
    fit_rows = max(8, int(0.6 * vmem_limit) // max(bytes_per_row, 1))
    n_pad8 = _round_up(max(n, 8), 8)
    if n_pad8 <= min(row_block, fit_rows):
        blk_n = n_pad8
        n_pad = n_pad8
    else:
        blk_n = max(128, (min(row_block, fit_rows) // 128) * 128)
        n_pad = _round_up(n, blk_n)

    # Pad rows only when actually required (pure layout plumbing; feature dim
    # is left unpadded since the block's last dim equals the full extent).
    if n_pad != n:
        x_p = jnp.zeros((n_pad, d), jnp.float32).at[:n].set(x_f)
        c_p = jnp.zeros((n_pad, d), jnp.float32).at[:n].set(c_sel)
    else:
        x_p, c_p = x_f, c_sel

    per_row = pl.pallas_call(
        _center_loss_kernel,
        out_shape=jax.ShapeDtypeStruct((n_pad, 1), jnp.float32),
        grid_spec=pltpu.PrefetchScalarGridSpec(
            num_scalar_prefetch=0,
            grid=(n_pad // blk_n,),
            in_specs=[
                pl.BlockSpec((blk_n, d), lambda i: (i, 0)),   # features
                pl.BlockSpec((blk_n, d), lambda i: (i, 0)),   # gathered centers
            ],
            out_specs=pl.BlockSpec((blk_n, 1), lambda i: (i, 0)),
        ),
        compiler_params=pltpu.CompilerParams(
            dimension_semantics=("parallel",),
            vmem_limit_bytes=vmem_limit,
        ),
    )(x_p, c_p)

    # Padded rows are sliced away here; mean over the true batch size.
    return jnp.sum(per_row[:n, 0]) / jnp.float32(n)


def _reference_center_loss(x, labels, centers):
    """Plain-JAX reference mirroring the PyTorch module."""
    xf = x.astype(jnp.float32)
    cf = centers.astype(jnp.float32)
    distmat = (jnp.sum(xf * xf, axis=1, keepdims=True)
               + jnp.sum(cf * cf, axis=1)[None, :]
               - 2.0 * jnp.dot(xf, cf.T, precision=jax.lax.Precision.HIGHEST))
    sel = jnp.take_along_axis(distmat, labels[:, None].astype(jnp.int32), axis=1)[:, 0]
    return jnp.mean(jnp.clip(sel, 1e-12, 1e12))


if __name__ == "__main__":
    key = jax.random.PRNGKey(0)
    kx, kc, kl = jax.random.split(key, 3)

    batch, feat_dim, num_classes = 8, 32, 10
    x = jax.random.normal(kx, (batch, feat_dim), dtype=jnp.float32)
    centers = jax.random.normal(kc, (num_classes, feat_dim), dtype=jnp.float32)
    labels = jax.random.randint(kl, (batch,), 0, num_classes, dtype=jnp.int32)

    loss = center_loss(x, labels, centers)
    jax.block_until_ready(loss)

    ref = _reference_center_loss(x, labels, centers)
    assert jnp.allclose(loss, ref, rtol=1e-4, atol=1e-4), (loss, ref)

    print("KERNEL_OK")
</pallas_src>

<mosaic_0001>
module attributes {stable_mosaic.version = 11 : i64} {
  func.func @_center_loss_kernel(%arg0: i32, %arg1: memref<8x32xf32, #tpu.memory_space<vmem>>, %arg2: memref<8x32xf32, #tpu.memory_space<vmem>>, %arg3: memref<8x1xf32, #tpu.memory_space<vmem>>) attributes {dimension_semantics = [#tpu.dimension_semantics<parallel>], iteration_bounds = array<i64: 1>, scalar_prefetch = 0 : i64, scratch_operands = 0 : i64, tpu.core_type = #tpu.core_type<tc>, window_params = [{transform_indices = @transform_0, window_bounds = array<i64: 8, 32>}, {transform_indices = @transform_1, window_bounds = array<i64: 8, 32>}, {transform_indices = @transform_2, window_bounds = array<i64: 8, 1>}]} {
    %c0 = arith.constant 0 : index
    %c0_0 = arith.constant 0 : index
    %0 = vector.load %arg1[%c0, %c0_0] : memref<8x32xf32, #tpu.memory_space<vmem>>, vector<8x32xf32>
    %c0_1 = arith.constant 0 : index
    %c0_2 = arith.constant 0 : index
    %1 = vector.load %arg2[%c0_1, %c0_2] : memref<8x32xf32, #tpu.memory_space<vmem>>, vector<8x32xf32>
    %2 = arith.subf %0, %1 : vector<8x32xf32>
    %3 = arith.mulf %2, %2 : vector<8x32xf32>
    %cst = arith.constant dense<0.000000e+00> : vector<8xf32>
    %4 = vector.multi_reduction <add>, %3, %cst [1] : vector<8x32xf32> to vector<8xf32>
    %5 = vector.shape_cast %4 : vector<8xf32> to vector<8x1xf32>
    %cst_3 = arith.constant 9.99999996E-13 : f32
    %cst_4 = arith.constant 9.99999995E+11 : f32
    %6 = vector.broadcast %cst_3 : f32 to vector<8x1xf32>
    %7 = arith.maximumf %6, %5 : vector<8x1xf32>
    %8 = vector.broadcast %cst_4 : f32 to vector<8x1xf32>
    %9 = arith.minimumf %8, %7 : vector<8x1xf32>
    %c0_5 = arith.constant 0 : index
    %c0_6 = arith.constant 0 : index
    %10 = vector.load %arg3[%c0_5, %c0_6] : memref<8x1xf32, #tpu.memory_space<vmem>>, vector<8x1xf32>
    tpu.vector_store %arg3[%c0_5, %c0_6], %9 {strides = array<i32>} : memref<8x1xf32, #tpu.memory_space<vmem>>, vector<8x1xf32>,
    return
  }
  func.func @transform_0(%arg0: i32) -> (i32, i32) {
    %c0_i32 = arith.constant 0 : i32
    %c0_i32_0 = arith.constant 0 : i32
    return %arg0, %c0_i32 : i32, i32
  }
  func.func @transform_1(%arg0: i32) -> (i32, i32) {
    %c0_i32 = arith.constant 0 : i32
    %c0_i32_0 = arith.constant 0 : i32
    return %arg0, %c0_i32 : i32, i32
  }
  func.func @transform_2(%arg0: i32) -> (i32, i32) {
    %c0_i32 = arith.constant 0 : i32
    %c0_i32_0 = arith.constant 0 : i32
    return %arg0, %c0_i32 : i32, i32
  }
}

</mosaic_0001>

<llo_original>
// kernel: tpu_custom_call.1
$region0: #{tpu_custom_call.1}
  #allocation0 [shape = 'u32[]', space=smem, size = 0x4, offset = 0x4, fixed_abs, tag = 'smem constant byte address 0x4 - core index']
  #allocation1 [shape = 'u32[72,128]{1,0:T(1,128)}', space=vmem, size = 0x9000, scoped, tag = 'internal scratch']
  %s0 = inlined_call_operand.hbm [shape: f32[8,32], index: 0, kind: input, shape index: {}]
  %s1 = inlined_call_operand.hbm [shape: f32[8,32], index: 1, kind: input, shape index: {}]
  %s2 = inlined_call_operand.vmem [shape: f32[8,1], index: 2, kind: output, shape index: {}]
  %s3 = sld [smem:[#allocation0]]
  $region26: #{tpu_custom_call.1} parent=0
    _
  %s5 = ssub.s32 1, %s3
  %s6 = scalar_select 0, %s5, %s3
  $region1: #{tpu_custom_call.1} parent=0
    #allocation2 [shape = 'u8[4096]{0}', space=vmem, size = 0x1000, scoped, tag = 'input window, operand 0, single buffered']
    #allocation3 [shape = 's32[1]{0}', space=sflag, size = 0x4, scoped, tag = 'scoped memory for tpu_custom_call.1']
    #allocation4 [shape = 'u8[4096]{0}', space=vmem, size = 0x1000, scoped, tag = 'input window, operand 1, single buffered']
    #allocation5 [shape = 's32[1]{0}', space=sflag, size = 0x4, scoped, tag = 'scoped memory for tpu_custom_call.1']
    %7 = vsyncpa [#allocation3], 0
    %8 = vsyncpa [#allocation5], 0
    // Predicated region
    $region2: #{tpu_custom_call.1} parent=1 // pred_check
      _
    $region3: #{tpu_custom_call.1} parent=1 // pred_check_branch
      %10 = sbr.rel (0) target = $region5
    $region4: #{tpu_custom_call.1} parent=1 // pred_region
      %12 = vsyncadd [#allocation3], 0
      %s14 = sshll.u32 %s0, 4
      %s15 = int_to_ptr.hbm [resolvable:$true] %s14
      %s16 = sshll.u32 [#allocation2], 4
      %s17 = int_to_ptr.vmem [resolvable:$true] %s16
      %19 = dma.hbm_to_vmem [thread:$0]  %s15, 128, %s17, [#allocation3]
    $region5: #{tpu_custom_call.1} parent=1 // pred_fallthru
      _
    // Predicated region
    $region6: #{tpu_custom_call.1} parent=1 // pred_check
      _
    $region7: #{tpu_custom_call.1} parent=1 // pred_check_branch
      %21 = sbr.rel (0) target = $region9
    $region8: #{tpu_custom_call.1} parent=1 // pred_region
      %23 = vsyncadd [#allocation5], 0
      %s25 = sshll.u32 %s1, 4
      %s26 = int_to_ptr.hbm [resolvable:$true] %s25
      %s27 = sshll.u32 [#allocation4], 4
      %s28 = int_to_ptr.vmem [resolvable:$true] %s27
      %30 = dma.hbm_to_vmem [thread:$0]  %s26, 128, %s28, [#allocation5]
    $region9: #{tpu_custom_call.1} parent=1 // pred_fallthru
      _
    // Predicated region
    $region10: #{tpu_custom_call.1} parent=1 // pred_check
      _
    $region11: #{tpu_custom_call.1} parent=1 // pred_check_branch
      %32 = sbr.rel (0) target = $region13
    $region12: #{tpu_custom_call.1} parent=1 // pred_region
      %34 = dma.done [#allocation3], 128
    $region13: #{tpu_custom_call.1} parent=1 // pred_fallthru
      _
    // Predicated region
    $region14: #{tpu_custom_call.1} parent=1 // pred_check
      _
    $region15: #{tpu_custom_call.1} parent=1 // pred_check_branch
      %36 = sbr.rel (0) target = $region17
    $region16: #{tpu_custom_call.1} parent=1 // pred_region
      %38 = dma.done [#allocation5], 128
    $region17: #{tpu_custom_call.1} parent=1 // pred_fallthru
      _
    %v39 = vld [vmem:[#allocation2] sm:$0xff]
    %v40 = vld [vmem:[#allocation4] sm:$0xff]
    %v41 = vsub.f32 %v39, %v40
    %v42 = vmul.f32 %v41, %v41
    %vm43 = vcmask 261120
    %v44 = vsel %vm43, %v42, 0.0
    %45 = vadd.xlane.f32.xlu0 %v44
    %v46 = vpop.xlane.xlu0 %45
    %v47 = vmax.f32 %v46, 1e-12
    %v48 = vmin.f32 %v47, 1e+12
    %vm49 = vcmask 7168
    %50 = vst.msk [vmem:[%s2] sm:$0xff] %vm49, %v48
    // Predicated region
    $region18: #{tpu_custom_call.1} parent=1 // pred_check
      _
    $region19: #{tpu_custom_call.1} parent=1 // pred_check_branch
      %52 = sbr.rel (0) target = $region21
    $region20: #{tpu_custom_call.1} parent=1 // pred_region
      _
    $region21: #{tpu_custom_call.1} parent=1 // pred_fallthru
      _
    // Predicated region
    $region22: #{tpu_custom_call.1} parent=1 // pred_check
      _
    $region23: #{tpu_custom_call.1} parent=1 // pred_check_branch
      %54 = sbr.rel (0) target = $region25
    $region24: #{tpu_custom_call.1} parent=1 // pred_region
      _
    $region25: #{tpu_custom_call.1} parent=1 // pred_fallthru
      _
    %55 = vsyncpa [#allocation3], 1
    %56 = vsyncpa [#allocation5], 1

</llo_original>
